<compile_context>
chip_gen: v7x
topology: tpu7x:2x2x1
jax: 0.10.0
libtpu: 0.0.40
codegen_flags: <defaults>
</compile_context>

<pallas_src>
import functools

import jax
import jax.numpy as jnp
from jax.experimental import pallas as pl
from jax.experimental.pallas import tpu as pltpu


def _round_up(x: int, m: int) -> int:
    return (x + m - 1) // m * m


def _gaussian_rbf_kernel(d_ref, off_ref, coeff_ref, o_ref):
    # d_ref:     (tile_n, 1)       distances tile (sublane axis = edges)
    # off_ref:   (1, n_rbf_pad)    RBF centers (resident, lane axis)
    # coeff_ref: (1, n_rbf_pad)    precomputed -0.5 / widths^2
    # o_ref:     (tile_n, n_rbf_pad)
    diff = d_ref[...] - off_ref[...]                       # broadcast -> (tile_n, n_rbf_pad)
    o_ref[...] = jnp.exp(coeff_ref[...] * (diff * diff)).astype(o_ref.dtype)


@functools.partial(jax.jit, static_argnames=("tile_n", "out_dtype"))
def gaussian_rbf_pallas(distances, offsets, widths, *, tile_n=1024,
                        out_dtype=jnp.float32):
    """distances: any shape (...,); returns (..., n_rbf) in `out_dtype`."""
    orig_shape = distances.shape
    n_rbf = offsets.shape[0]

    d_flat = distances.reshape(-1).astype(jnp.float32)
    n = d_flat.shape[0]

    # Lane-dense output: pad the RBF axis up to a multiple of 128.
    n_rbf_pad = _round_up(n_rbf, 128)

    # Adaptive tile: large enough to amortize per-step overhead, multiple of
    # 256 (sublane-aligned), never larger than the padded edge count so small
    # inputs are not over-padded and large inputs keep a many-step grid.
    tile = min(_round_up(tile_n, 256), _round_up(n, 256))

    # Pad edge count to a multiple of the tile (padded rows are discarded).
    n_pad = (-n) % tile
    n_total = n + n_pad
    d_2d = jnp.pad(d_flat, (0, n_pad)).reshape(n_total, 1)

    # Fixed parameters: precompute coeff once (no per-tile divide) and pad the
    # RBF axis. coeff padding of 0.0 -> exp(0) = 1 in dead lanes (finite, sliced).
    offsets_f32 = offsets.astype(jnp.float32)
    coeff = -0.5 / (widths.astype(jnp.float32) ** 2)
    off_2d = jnp.pad(offsets_f32, (0, n_rbf_pad - n_rbf)).reshape(1, n_rbf_pad)
    coeff_2d = jnp.pad(coeff, (0, n_rbf_pad - n_rbf)).reshape(1, n_rbf_pad)

    grid = (n_total // tile,)

    out = pl.pallas_call(
        _gaussian_rbf_kernel,
        out_shape=jax.ShapeDtypeStruct((n_total, n_rbf_pad), out_dtype),
        grid_spec=pltpu.PrefetchScalarGridSpec(
            num_scalar_prefetch=0,
            grid=grid,
            in_specs=[
                pl.BlockSpec((tile, 1), lambda i: (i, 0)),
                pl.BlockSpec((1, n_rbf_pad), lambda i: (0, 0)),
                pl.BlockSpec((1, n_rbf_pad), lambda i: (0, 0)),
            ],
            out_specs=pl.BlockSpec((tile, n_rbf_pad), lambda i: (i, 0)),
        ),
        compiler_params=pltpu.CompilerParams(
            dimension_semantics=("parallel",),
        ),
    )(d_2d, off_2d, coeff_2d)

    return out[:n, :n_rbf].reshape(*orig_shape, n_rbf)


def make_gaussian_rbf_params(n_rbf: int, cutoff: float, start: float = 0.0):
    """Deterministic parameter setup, mirroring GaussianRBF.__init__."""
    offsets = jnp.linspace(start, cutoff, n_rbf, dtype=jnp.float32)
    widths = jnp.full((n_rbf,), cutoff / n_rbf, dtype=jnp.float32)
    return offsets, widths


def _reference(distances, offsets, widths):
    coeff = -0.5 / widths ** 2
    diff = distances[..., None] - offsets
    return jnp.exp(coeff * diff ** 2)


if __name__ == "__main__":
    cutoff = 5.0
    key = jax.random.PRNGKey(0)

    # (distance shape, n_rbf): exercise lane padding (20, 32) and the
    # lane-aligned case (128), plus a multi-dim distances input.
    configs = [((200,), 20), ((2, 8, 16), 32), ((300,), 128)]

    out = ref = None
    offsets = widths = distances = None
    for d_shape, n_rbf in configs:
        offsets, widths = make_gaussian_rbf_params(n_rbf, cutoff)
        key, sub = jax.random.split(key)
        distances = jax.random.uniform(
            sub, d_shape, dtype=jnp.float32, minval=0.0, maxval=cutoff
        )

        out = jax.block_until_ready(gaussian_rbf_pallas(distances, offsets, widths))
        ref = _reference(distances, offsets, widths)

        assert out.shape == (*d_shape, n_rbf)
        assert jnp.allclose(out, ref, atol=1e-5, rtol=1e-5), "mismatch vs reference"

    # bf16 output path (halves HBM write traffic on this write-bound kernel).
    out_bf16 = jax.block_until_ready(
        gaussian_rbf_pallas(distances, offsets, widths, out_dtype=jnp.bfloat16)
    )
    assert out_bf16.dtype == jnp.bfloat16
    assert jnp.allclose(out_bf16.astype(jnp.float32), ref, atol=2e-2, rtol=2e-2)

    print("KERNEL_OK")
</pallas_src>

<mosaic_0001>
module attributes {stable_mosaic.version = 11 : i64} {
  func.func @_gaussian_rbf_kernel(%arg0: i32, %arg1: memref<256x1xf32, #tpu.memory_space<vmem>>, %arg2: memref<1x128xf32, #tpu.memory_space<vmem>>, %arg3: memref<1x128xf32, #tpu.memory_space<vmem>>, %arg4: memref<256x128xf32, #tpu.memory_space<vmem>>) attributes {dimension_semantics = [#tpu.dimension_semantics<parallel>], iteration_bounds = array<i64: 1>, scalar_prefetch = 0 : i64, scratch_operands = 0 : i64, tpu.core_type = #tpu.core_type<tc>, window_params = [{transform_indices = @transform_0, window_bounds = array<i64: 256, 1>}, {pipeline_mode = #tpu.pipeline_mode<synchronous>, transform_indices = @transform_1, window_bounds = array<i64: 1, 128>}, {pipeline_mode = #tpu.pipeline_mode<synchronous>, transform_indices = @transform_2, window_bounds = array<i64: 1, 128>}, {transform_indices = @transform_3, window_bounds = array<i64: 256, 128>}]} {
    %c0 = arith.constant 0 : index
    %c0_0 = arith.constant 0 : index
    %0 = vector.load %arg1[%c0, %c0_0] : memref<256x1xf32, #tpu.memory_space<vmem>>, vector<256x1xf32>
    %c0_1 = arith.constant 0 : index
    %c0_2 = arith.constant 0 : index
    %1 = vector.load %arg2[%c0_1, %c0_2] : memref<1x128xf32, #tpu.memory_space<vmem>>, vector<1x128xf32>
    %2 = vector.broadcast %0 : vector<256x1xf32> to vector<256x128xf32>
    %3 = vector.broadcast %1 : vector<1x128xf32> to vector<256x128xf32>
    %4 = arith.subf %2, %3 : vector<256x128xf32>
    %c0_3 = arith.constant 0 : index
    %c0_4 = arith.constant 0 : index
    %5 = vector.load %arg3[%c0_3, %c0_4] : memref<1x128xf32, #tpu.memory_space<vmem>>, vector<1x128xf32>
    %6 = arith.mulf %4, %4 : vector<256x128xf32>
    %7 = vector.broadcast %5 : vector<1x128xf32> to vector<256x128xf32>
    %8 = arith.mulf %7, %6 : vector<256x128xf32>
    %9 = math.exp %8 : vector<256x128xf32>
    %c0_5 = arith.constant 0 : index
    %c0_6 = arith.constant 0 : index
    %10 = vector.load %arg4[%c0_5, %c0_6] : memref<256x128xf32, #tpu.memory_space<vmem>>, vector<256x128xf32>
    tpu.vector_store %arg4[%c0_5, %c0_6], %9 {strides = array<i32>} : memref<256x128xf32, #tpu.memory_space<vmem>>, vector<256x128xf32>,
    return
  }
  func.func @transform_0(%arg0: i32) -> (i32, i32) {
    %c0_i32 = arith.constant 0 : i32
    %c0_i32_0 = arith.constant 0 : i32
    return %arg0, %c0_i32 : i32, i32
  }
  func.func @transform_1(%arg0: i32) -> (i32, i32) {
    %c0_i32 = arith.constant 0 : i32
    %c0_i32_0 = arith.constant 0 : i32
    %c0_i32_1 = arith.constant 0 : i32
    return %c0_i32, %c0_i32_0 : i32, i32
  }
  func.func @transform_2(%arg0: i32) -> (i32, i32) {
    %c0_i32 = arith.constant 0 : i32
    %c0_i32_0 = arith.constant 0 : i32
    %c0_i32_1 = arith.constant 0 : i32
    return %c0_i32, %c0_i32_0 : i32, i32
  }
  func.func @transform_3(%arg0: i32) -> (i32, i32) {
    %c0_i32 = arith.constant 0 : i32
    %c0_i32_0 = arith.constant 0 : i32
    return %arg0, %c0_i32 : i32, i32
  }
}

</mosaic_0001>

<llo_original>
// kernel: gaussian_rbf_pallas.1
$region0: #{gaussian_rbf_pallas.1}
  #allocation0 [shape = 'u32[]', space=smem, size = 0x4, offset = 0x4, fixed_abs, tag = 'smem constant byte address 0x4 - core index']
  #allocation1 [shape = 'u32[144,128]{1,0:T(1,128)}', space=vmem, size = 0x12000, scoped, tag = 'internal scratch']
  %s0 = inlined_call_operand.vmem [shape: f32[256,1], index: 0, kind: input, shape index: {}]
  %s1 = inlined_call_operand.vmem [shape: f32[1,128], index: 1, kind: input, shape index: {}]
  %s2 = inlined_call_operand.vmem [shape: f32[1,128], index: 2, kind: input, shape index: {}]
  %s3 = inlined_call_operand.vmem [shape: f32[256,128], index: 3, kind: output, shape index: {}]
  %s4 = sld [smem:[#allocation0]]
  $region22: #{gaussian_rbf_pallas.1} parent=0
    _
  %s6 = ssub.s32 1, %s4
  %s7 = scalar_select 0, %s6, %s4
  // Predicated region
  $region2: #{gaussian_rbf_pallas.1} parent=0 // pred_check
    _
  $region3: #{gaussian_rbf_pallas.1} parent=0 // pred_check_branch
    %9 = sbr.rel (0) target = $region5
  $region4: #{gaussian_rbf_pallas.1} parent=0 // pred_region
    _
  $region5: #{gaussian_rbf_pallas.1} parent=0 // pred_fallthru
    _
  // Predicated region
  $region6: #{gaussian_rbf_pallas.1} parent=0 // pred_check
    _
  $region7: #{gaussian_rbf_pallas.1} parent=0 // pred_check_branch
    %11 = sbr.rel (0) target = $region9
  $region8: #{gaussian_rbf_pallas.1} parent=0 // pred_region
    _
  $region9: #{gaussian_rbf_pallas.1} parent=0 // pred_fallthru
    _
  // Predicated region
  $region10: #{gaussian_rbf_pallas.1} parent=0 // pred_check
    _
  $region11: #{gaussian_rbf_pallas.1} parent=0 // pred_check_branch
    %13 = sbr.rel (0) target = $region13
  $region12: #{gaussian_rbf_pallas.1} parent=0 // pred_region
    _
  $region13: #{gaussian_rbf_pallas.1} parent=0 // pred_fallthru
    _
  %v14 = vld [vmem:[%s0] sm:$0xff]
  %v15 = vld [vmem:[%s0 + $0x8] sm:$0xff]
  %v16 = vld [vmem:[%s0 + $0x10] sm:$0xff]
  %v17 = vld [vmem:[%s0 + $0x18] sm:$0xff]
  %v18 = vld [vmem:[%s0 + $0x20] sm:$0xff]
  %v19 = vld [vmem:[%s0 + $0x28] sm:$0xff]
  %v20 = vld [vmem:[%s0 + $0x30] sm:$0xff]
  %v21 = vld [vmem:[%s0 + $0x38] sm:$0xff]
  %v22 = vld [vmem:[%s0 + $0x40] sm:$0xff]
  %v23 = vld [vmem:[%s0 + $0x48] sm:$0xff]
  %v24 = vld [vmem:[%s0 + $0x50] sm:$0xff]
  %v25 = vld [vmem:[%s0 + $0x58] sm:$0xff]
  %v26 = vld [vmem:[%s0 + $0x60] sm:$0xff]
  %v27 = vld [vmem:[%s0 + $0x68] sm:$0xff]
  %v28 = vld [vmem:[%s0 + $0x70] sm:$0xff]
  %v29 = vld [vmem:[%s0 + $0x78] sm:$0xff]
  %v30 = vld [vmem:[%s0 + $0x80] sm:$0xff]
  %v31 = vld [vmem:[%s0 + $0x88] sm:$0xff]
  %v32 = vld [vmem:[%s0 + $0x90] sm:$0xff]
  %v33 = vld [vmem:[%s0 + $0x98] sm:$0xff]
  %v34 = vld [vmem:[%s0 + $0xa0] sm:$0xff]
  %v35 = vld [vmem:[%s0 + $0xa8] sm:$0xff]
  %v36 = vld [vmem:[%s0 + $0xb0] sm:$0xff]
  %v37 = vld [vmem:[%s0 + $0xb8] sm:$0xff]
  %v38 = vld [vmem:[%s0 + $0xc0] sm:$0xff]
  %v39 = vld [vmem:[%s0 + $0xc8] sm:$0xff]
  %v40 = vld [vmem:[%s0 + $0xd0] sm:$0xff]
  %v41 = vld [vmem:[%s0 + $0xd8] sm:$0xff]
  %v42 = vld [vmem:[%s0 + $0xe0] sm:$0xff]
  %v43 = vld [vmem:[%s0 + $0xe8] sm:$0xff]
  %v44 = vld [vmem:[%s0 + $0xf0] sm:$0xff]
  %v45 = vld [vmem:[%s0 + $0xf8] sm:$0xff]
  %v46 = vld [vmem:[%s1] sm:$0x1]
  %48 = vset.pattern.permute.xlu0 0
  %49 = vperm.xlu0 %48, %v14
  %v50 = vpop.permute.xlu0 %49
  %53 = vset.pattern.permute.xlu0 0
  %54 = vperm.xlu0 %53, %v15
  %v55 = vpop.permute.xlu0 %54
  %58 = vset.pattern.permute.xlu0 0
  %59 = vperm.xlu0 %58, %v16
  %v60 = vpop.permute.xlu0 %59
  %63 = vset.pattern.permute.xlu0 0
  %64 = vperm.xlu0 %63, %v17
  %v65 = vpop.permute.xlu0 %64
  %68 = vset.pattern.permute.xlu0 0
  %69 = vperm.xlu0 %68, %v18
  %v70 = vpop.permute.xlu0 %69
  %73 = vset.pattern.permute.xlu0 0
  %74 = vperm.xlu0 %73, %v19
  %v75 = vpop.permute.xlu0 %74
  %78 = vset.pattern.permute.xlu0 0
  %79 = vperm.xlu0 %78, %v20
  %v80 = vpop.permute.xlu0 %79
  %83 = vset.pattern.permute.xlu0 0
  %84 = vperm.xlu0 %83, %v21
  %v85 = vpop.permute.xlu0 %84
  %88 = vset.pattern.permute.xlu0 0
  %89 = vperm.xlu0 %88, %v22
  %v90 = vpop.permute.xlu0 %89
  %93 = vset.pattern.permute.xlu0 0
  %94 = vperm.xlu0 %93, %v23
  %v95 = vpop.permute.xlu0 %94
  %98 = vset.pattern.permute.xlu0 0
  %99 = vperm.xlu0 %98, %v24
  %v100 = vpop.permute.xlu0 %99
  %103 = vset.pattern.permute.xlu0 0
  %104 = vperm.xlu0 %103, %v25
  %v105 = vpop.permute.xlu0 %104
  %108 = vset.pattern.permute.xlu0 0
  %109 = vperm.xlu0 %108, %v26
  %v110 = vpop.permute.xlu0 %109
  %113 = vset.pattern.permute.xlu0 0
  %114 = vperm.xlu0 %113, %v27
  %v115 = vpop.permute.xlu0 %114
  %118 = vset.pattern.permute.xlu0 0
  %119 = vperm.xlu0 %118, %v28
  %v120 = vpop.permute.xlu0 %119
  %123 = vset.pattern.permute.xlu0 0
  %124 = vperm.xlu0 %123, %v29
  %v125 = vpop.permute.xlu0 %124
  %128 = vset.pattern.permute.xlu0 0
  %129 = vperm.xlu0 %128, %v30
  %v130 = vpop.permute.xlu0 %129
  %133 = vset.pattern.permute.xlu0 0
  %134 = vperm.xlu0 %133, %v31
  %v135 = vpop.permute.xlu0 %134
  %138 = vset.pattern.permute.xlu0 0
  %139 = vperm.xlu0 %138, %v32
  %v140 = vpop.permute.xlu0 %139
  %143 = vset.pattern.permute.xlu0 0
  %144 = vperm.xlu0 %143, %v33
  %v145 = vpop.permute.xlu0 %144
  %148 = vset.pattern.permute.xlu0 0
  %149 = vperm.xlu0 %148, %v34
  %v150 = vpop.permute.xlu0 %149
  %153 = vset.pattern.permute.xlu0 0
  %154 = vperm.xlu0 %153, %v35
  %v155 = vpop.permute.xlu0 %154
  %158 = vset.pattern.permute.xlu0 0
  %159 = vperm.xlu0 %158, %v36
  %v160 = vpop.permute.xlu0 %159
  %163 = vset.pattern.permute.xlu0 0
  %164 = vperm.xlu0 %163, %v37
  %v165 = vpop.permute.xlu0 %164
  %168 = vset.pattern.permute.xlu0 0
  %169 = vperm.xlu0 %168, %v38
  %v170 = vpop.permute.xlu0 %169
  %173 = vset.pattern.permute.xlu0 0
  %174 = vperm.xlu0 %173, %v39
  %v175 = vpop.permute.xlu0 %174
  %178 = vset.pattern.permute.xlu0 0
  %179 = vperm.xlu0 %178, %v40
  %v180 = vpop.permute.xlu0 %179
  %183 = vset.pattern.permute.xlu0 0
  %184 = vperm.xlu0 %183, %v41
  %v185 = vpop.permute.xlu0 %184
  %188 = vset.pattern.permute.xlu0 0
  %189 = vperm.xlu0 %188, %v42
  %v190 = vpop.permute.xlu0 %189
  %193 = vset.pattern.permute.xlu0 0
  %194 = vperm.xlu0 %193, %v43
  %v195 = vpop.permute.xlu0 %194
  %198 = vset.pattern.permute.xlu0 0
  %199 = vperm.xlu0 %198, %v44
  %v200 = vpop.permute.xlu0 %199
  %203 = vset.pattern.permute.xlu0 0
  %204 = vperm.xlu0 %203, %v45
  %v205 = vpop.permute.xlu0 %204
  %v208 = vlaneseq
  %v209 = vshrl.u32 %v208, 7
  %v210 = vsub.s32 0, %v209
  %v211 = vrot.slane %v46, %v210
  %v213 = vsub.f32 %v50, %v211
  %v214 = vsub.f32 %v55, %v211
  %v215 = vsub.f32 %v60, %v211
  %v216 = vsub.f32 %v65, %v211
  %v217 = vsub.f32 %v70, %v211
  %v218 = vsub.f32 %v75, %v211
  %v219 = vsub.f32 %v80, %v211
  %v220 = vsub.f32 %v85, %v211
  %v221 = vsub.f32 %v90, %v211
  %v222 = vsub.f32 %v95, %v211
  %v223 = vsub.f32 %v100, %v211
  %v224 = vsub.f32 %v105, %v211
  %v225 = vsub.f32 %v110, %v211
  %v226 = vsub.f32 %v115, %v211
  %v227 = vsub.f32 %v120, %v211
  %v228 = vsub.f32 %v125, %v211
  %v229 = vsub.f32 %v130, %v211
  %v230 = vsub.f32 %v135, %v211
  %v231 = vsub.f32 %v140, %v211
  %v232 = vsub.f32 %v145, %v211
  %v233 = vsub.f32 %v150, %v211
  %v234 = vsub.f32 %v155, %v211
  %v235 = vsub.f32 %v160, %v211
  %v236 = vsub.f32 %v165, %v211
  %v237 = vsub.f32 %v170, %v211
  %v238 = vsub.f32 %v175, %v211
  %v239 = vsub.f32 %v180, %v211
  %v240 = vsub.f32 %v185, %v211
  %v241 = vsub.f32 %v190, %v211
  %v242 = vsub.f32 %v195, %v211
  %v243 = vsub.f32 %v200, %v211
  %v244 = vsub.f32 %v205, %v211
  %v245 = vld [vmem:[%s2] sm:$0x1]
  %v246 = vmul.f32 %v213, %v213
  %v247 = vmul.f32 %v214, %v214
  %v248 = vmul.f32 %v215, %v215
  %v249 = vmul.f32 %v216, %v216
  %v250 = vmul.f32 %v217, %v217
  %v251 = vmul.f32 %v218, %v218
  %v252 = vmul.f32 %v219, %v219
  %v253 = vmul.f32 %v220, %v220
  %v254 = vmul.f32 %v221, %v221
  %v255 = vmul.f32 %v222, %v222
  %v256 = vmul.f32 %v223, %v223
  %v257 = vmul.f32 %v224, %v224
  %v258 = vmul.f32 %v225, %v225
  %v259 = vmul.f32 %v226, %v226
  %v260 = vmul.f32 %v227, %v227
  %v261 = vmul.f32 %v228, %v228
  %v262 = vmul.f32 %v229, %v229
  %v263 = vmul.f32 %v230, %v230
  %v264 = vmul.f32 %v231, %v231
  %v265 = vmul.f32 %v232, %v232
  %v266 = vmul.f32 %v233, %v233
  %v267 = vmul.f32 %v234, %v234
  %v268 = vmul.f32 %v235, %v235
  %v269 = vmul.f32 %v236, %v236
  %v270 = vmul.f32 %v237, %v237
  %v271 = vmul.f32 %v238, %v238
  %v272 = vmul.f32 %v239, %v239
  %v273 = vmul.f32 %v240, %v240
  %v274 = vmul.f32 %v241, %v241
  %v275 = vmul.f32 %v242, %v242
  %v276 = vmul.f32 %v243, %v243
  %v277 = vmul.f32 %v244, %v244
  %v279 = vlaneseq
  %v280 = vshrl.u32 %v279, 7
  %v281 = vsub.s32 0, %v280
  %v282 = vrot.slane %v245, %v281
  %v284 = vmul.f32 %v282, %v246
  %v285 = vmul.f32 %v282, %v247
  %v286 = vmul.f32 %v282, %v248
  %v287 = vmul.f32 %v282, %v249
  %v288 = vmul.f32 %v282, %v250
  %v289 = vmul.f32 %v282, %v251
  %v290 = vmul.f32 %v282, %v252
  %v291 = vmul.f32 %v282, %v253
  %v292 = vmul.f32 %v282, %v254
  %v293 = vmul.f32 %v282, %v255
  %v294 = vmul.f32 %v282, %v256
  %v295 = vmul.f32 %v282, %v257
  %v296 = vmul.f32 %v282, %v258
  %v297 = vmul.f32 %v282, %v259
  %v298 = vmul.f32 %v282, %v260
  %v299 = vmul.f32 %v282, %v261
  %v300 = vmul.f32 %v282, %v262
  %v301 = vmul.f32 %v282, %v263
  %v302 = vmul.f32 %v282, %v264
  %v303 = vmul.f32 %v282, %v265
  %v304 = vmul.f32 %v282, %v266
  %v305 = vmul.f32 %v282, %v267
  %v306 = vmul.f32 %v282, %v268
  %v307 = vmul.f32 %v282, %v269
  %v308 = vmul.f32 %v282, %v270
  %v309 = vmul.f32 %v282, %v271
  %v310 = vmul.f32 %v282, %v272
  %v311 = vmul.f32 %v282, %v273
  %v312 = vmul.f32 %v282, %v274
  %v313 = vmul.f32 %v282, %v275
  %v314 = vmul.f32 %v282, %v276
  %v315 = vmul.f32 %v282, %v277
  %v316 = vmul.f32 %v284, 1.442695
  %v317 = vpow.pop %v316
  %v318 = vmul.f32 %v285, 1.442695
  %v319 = vpow.pop %v318
  %v320 = vmul.f32 %v286, 1.442695
  %v321 = vpow.pop %v320
  %v322 = vmul.f32 %v287, 1.442695
  %v323 = vpow.pop %v322
  %v324 = vmul.f32 %v288, 1.442695
  %v325 = vpow.pop %v324
  %v326 = vmul.f32 %v289, 1.442695
  %v327 = vpow.pop %v326
  %v328 = vmul.f32 %v290, 1.442695
  %v329 = vpow.pop %v328
  %v330 = vmul.f32 %v291, 1.442695
  %v331 = vpow.pop %v330
  %v332 = vmul.f32 %v292, 1.442695
  %v333 = vpow.pop %v332
  %v334 = vmul.f32 %v293, 1.442695
  %v335 = vpow.pop %v334
  %v336 = vmul.f32 %v294, 1.442695
  %v337 = vpow.pop %v336
  %v338 = vmul.f32 %v295, 1.442695
  %v339 = vpow.pop %v338
  %v340 = vmul.f32 %v296, 1.442695
  %v341 = vpow.pop %v340
  %v342 = vmul.f32 %v297, 1.442695
  %v343 = vpow.pop %v342
  %v344 = vmul.f32 %v298, 1.442695
  %v345 = vpow.pop %v344
  %v346 = vmul.f32 %v299, 1.442695
  %v347 = vpow.pop %v346
  %v348 = vmul.f32 %v300, 1.442695
  %v349 = vpow.pop %v348
  %v350 = vmul.f32 %v301, 1.442695
  %v351 = vpow.pop %v350
  %v352 = vmul.f32 %v302, 1.442695
  %v353 = vpow.pop %v352
  %v354 = vmul.f32 %v303, 1.442695
  %v355 = vpow.pop %v354
  %v356 = vmul.f32 %v304, 1.442695
  %v357 = vpow.pop %v356
  %v358 = vmul.f32 %v305, 1.442695
  %v359 = vpow.pop %v358
  %v360 = vmul.f32 %v306, 1.442695
  %v361 = vpow.pop %v360
  %v362 = vmul.f32 %v307, 1.442695
  %v363 = vpow.pop %v362
  %v364 = vmul.f32 %v308, 1.442695
  %v365 = vpow.pop %v364
  %v366 = vmul.f32 %v309, 1.442695
  %v367 = vpow.pop %v366
  %v368 = vmul.f32 %v310, 1.442695
  %v369 = vpow.pop %v368
  %v370 = vmul.f32 %v311, 1.442695
  %v371 = vpow.pop %v370
  %v372 = vmul.f32 %v312, 1.442695
  %v373 = vpow.pop %v372
  %v374 = vmul.f32 %v313, 1.442695
  %v375 = vpow.pop %v374
  %v376 = vmul.f32 %v314, 1.442695
  %v377 = vpow.pop %v376
  %v378 = vmul.f32 %v315, 1.442695
  %v379 = vpow.pop %v378
  %380 = vst [vmem:[%s3] sm:$0xff] %v317
  %381 = vst [vmem:[%s3 + $0x8] sm:$0xff] %v319
  %382 = vst [vmem:[%s3 + $0x10] sm:$0xff] %v321
  %383 = vst [vmem:[%s3 + $0x18] sm:$0xff] %v323
  %384 = vst [vmem:[%s3 + $0x20] sm:$0xff] %v325
  %385 = vst [vmem:[%s3 + $0x28] sm:$0xff] %v327
  %386 = vst [vmem:[%s3 + $0x30] sm:$0xff] %v329
  %387 = vst [vmem:[%s3 + $0x38] sm:$0xff] %v331
  %388 = vst [vmem:[%s3 + $0x40] sm:$0xff] %v333
  %389 = vst [vmem:[%s3 + $0x48] sm:$0xff] %v335
  %390 = vst [vmem:[%s3 + $0x50] sm:$0xff] %v337
  %391 = vst [vmem:[%s3 + $0x58] sm:$0xff] %v339
  %392 = vst [vmem:[%s3 + $0x60] sm:$0xff] %v341
  %393 = vst [vmem:[%s3 + $0x68] sm:$0xff] %v343
  %394 = vst [vmem:[%s3 + $0x70] sm:$0xff] %v345
  %395 = vst [vmem:[%s3 + $0x78] sm:$0xff] %v347
  %396 = vst [vmem:[%s3 + $0x80] sm:$0xff] %v349
  %397 = vst [vmem:[%s3 + $0x88] sm:$0xff] %v351
  %398 = vst [vmem:[%s3 + $0x90] sm:$0xff] %v353
  %399 = vst [vmem:[%s3 + $0x98] sm:$0xff] %v355
  %400 = vst [vmem:[%s3 + $0xa0] sm:$0xff] %v357
  %401 = vst [vmem:[%s3 + $0xa8] sm:$0xff] %v359
  %402 = vst [vmem:[%s3 + $0xb0] sm:$0xff] %v361
  %403 = vst [vmem:[%s3 + $0xb8] sm:$0xff] %v363
  %404 = vst [vmem:[%s3 + $0xc0] sm:$0xff] %v365
  %405 = vst [vmem:[%s3 + $0xc8] sm:$0xff] %v367
  %406 = vst [vmem:[%s3 + $0xd0] sm:$0xff] %v369
  %407 = vst [vmem:[%s3 + $0xd8] sm:$0xff] %v371
  %408 = vst [vmem:[%s3 + $0xe0] sm:$0xff] %v373
  %409 = vst [vmem:[%s3 + $0xe8] sm:$0xff] %v375
  %410 = vst [vmem:[%s3 + $0xf0] sm:$0xff] %v377
  %411 = vst [vmem:[%s3 + $0xf8] sm:$0xff] %v379
  // Predicated region
  $region14: #{gaussian_rbf_pallas.1} parent=0 // pred_check
    _
  $region15: #{gaussian_rbf_pallas.1} parent=0 // pred_check_branch
    %413 = sbr.rel (0) target = $region17
  $region16: #{gaussian_rbf_pallas.1} parent=0 // pred_region
    _
  $region17: #{gaussian_rbf_pallas.1} parent=0 // pred_fallthru
    _
  // Predicated region
  $region18: #{gaussian_rbf_pallas.1} parent=0 // pred_check
    _
  $region19: #{gaussian_rbf_pallas.1} parent=0 // pred_check_branch
    %415 = sbr.rel (0) target = $region21
  $region20: #{gaussian_rbf_pallas.1} parent=0 // pred_region
    _
  $region21: #{gaussian_rbf_pallas.1} parent=0 // pred_fallthru
    _

</llo_original>
